<compile_context>
chip_gen: v7x
topology: tpu7x:2x2x1
jax: 0.10.0
libtpu: 0.0.40
codegen_flags: <defaults>
</compile_context>

<pallas_src>
import jax
import jax.numpy as jnp
from jax.experimental import pallas as pl
from jax.experimental.pallas import tpu as pltpu


def _fused_vote_kernel(nums_ref,            # SMEM (B,) int32  (scalar prefetch)
                       ax_ref,              # VMEM (B, Da)   bf16
                       wa_ref,              # VMEM (Da, Cp)  bf16
                       ba_ref,              # VMEM (1, Cp)   f32
                       ix_ref,              # VMEM (Tr, Di)  bf16  (row tile)
                       wi_ref,              # VMEM (Di, Cp)  bf16
                       bi_ref,              # VMEM (1, Cp)   f32
                       out_ref,             # VMEM (B, Cp)   f32
                       acc_ref):            # VMEM scratch (B, Cp) f32
    r = pl.program_id(0)
    tile_rows = ix_ref.shape[0]
    B = out_ref.shape[0]

    @pl.when(r == 0)
    def _init():
        acc_ref[...] = jnp.zeros_like(acc_ref)

    # Data-dependent skip: tiles entirely past the last voting row contribute
    # nothing, so don't even run their encoder matmul.
    max_num = nums_ref[0]
    for i in range(1, B):
        max_num = jnp.maximum(max_num, nums_ref[i])
    row0 = r * tile_rows

    @pl.when(row0 < max_num)
    def _tile():
        # Image encoder for this row tile: MXU, bf16 in / f32 accumulate.
        img_cls = jnp.dot(ix_ref[...], wi_ref[...],
                          preferred_element_type=jnp.float32) + bi_ref[...]
        row_ids = row0 + jax.lax.broadcasted_iota(jnp.int32, (tile_rows, 1), 0)
        # Per-sample masked partial sum (B is small & static).  This keeps the
        # variable-length reduction off the MXU (no degenerate M=B matmul).
        for i in range(B):
            mask = (row_ids < nums_ref[i]).astype(jnp.float32)   # (Tr, 1) f32
            acc_ref[pl.ds(i, 1), :] += jnp.sum(img_cls * mask, axis=0,
                                               keepdims=True)

    @pl.when(r == pl.num_programs(0) - 1)
    def _finalize():
        # Audio encoder (tiny) + combine, done once on the last grid step.
        audio_cls = jnp.dot(ax_ref[...], wa_ref[...],
                            preferred_element_type=jnp.float32) + ba_ref[...]
        # Build the per-sample 1/(1+num) weights from SMEM scalars.
        row_iota = jax.lax.broadcasted_iota(jnp.int32, (B, 1), 0)
        denom = jnp.ones((B, 1), jnp.float32)
        for i in range(B):
            denom = denom + jnp.where(row_iota == i,
                                      nums_ref[i].astype(jnp.float32), 0.0)
        w = pl.reciprocal(denom, approx=True)                    # EUP slot
        out_ref[...] = (acc_ref[...] + audio_cls) * w


def majority_voting_forward(audio_x, image_x, nums, params, *, tile_rows=128):
    """Fused MajorityVoting forward.  audio_x:(B,Da) image_x:(N,Di) nums:(B,)"""
    B, Da = audio_x.shape
    N, Di = image_x.shape
    C = params["wa"].shape[1]
    c_pad = pl.cdiv(C, 128) * 128            # lane-dense class dimension

    def pad_c(a):
        return jnp.pad(a, ((0, 0), (0, c_pad - C)))

    wa = pad_c(params["wa"]).astype(jnp.bfloat16)
    wi = pad_c(params["wi"]).astype(jnp.bfloat16)
    ba = pad_c(params["ba"]).astype(jnp.float32)
    bi = pad_c(params["bi"]).astype(jnp.float32)
    ax = audio_x.astype(jnp.bfloat16)

    n_tiles = pl.cdiv(N, tile_rows)
    n_pad = n_tiles * tile_rows
    ix = image_x.astype(jnp.bfloat16)
    if n_pad != N:
        # Padded rows have row_id >= N >= num_i, so the vote mask drops them.
        ix = jnp.pad(ix, ((0, n_pad - N), (0, 0)))

    grid_spec = pltpu.PrefetchScalarGridSpec(
        num_scalar_prefetch=1,               # nums -> SMEM scalars
        grid=(n_tiles,),
        in_specs=[
            pl.BlockSpec((B, Da), lambda r, ns: (0, 0)),          # audio_x
            pl.BlockSpec((Da, c_pad), lambda r, ns: (0, 0)),      # wa
            pl.BlockSpec((1, c_pad), lambda r, ns: (0, 0)),       # ba
            pl.BlockSpec((tile_rows, Di), lambda r, ns: (r, 0)),  # image rows
            pl.BlockSpec((Di, c_pad), lambda r, ns: (0, 0)),      # wi
            pl.BlockSpec((1, c_pad), lambda r, ns: (0, 0)),       # bi
        ],
        out_specs=pl.BlockSpec((B, c_pad), lambda r, ns: (0, 0)),
        scratch_shapes=[pltpu.VMEM((B, c_pad), jnp.float32)],
    )

    out_padded = pl.pallas_call(
        _fused_vote_kernel,
        out_shape=jax.ShapeDtypeStruct((B, c_pad), jnp.float32),
        grid_spec=grid_spec,
        compiler_params=pltpu.CompilerParams(
            dimension_semantics=("arbitrary",),   # row-tile axis is a reduction
            vmem_limit_bytes=32 * 1024 * 1024,    # v7x-safe scoped VMEM budget
        ),
    )(nums.astype(jnp.int32), ax, wa, ba, ix, wi, bi)

    return out_padded[:, :C]


# Pure-JAX f32 reference mirroring the PyTorch loop exactly
# (start_index never advances, same as the original module).
def reference_forward(audio_x, image_x, nums, params):
    audio_cls = audio_x @ params["wa"] + params["ba"]
    image_cls_all = image_x @ params["wi"] + params["bi"]
    outs = []
    for i in range(audio_x.shape[0]):
        num = int(nums[i])
        w = 1.0 / (1.0 + num)
        img = image_cls_all[0:num]                       # start_index stays 0
        stacked = jnp.concatenate([img, audio_cls[i][None, :]], axis=0)
        outs.append(jnp.sum(stacked * w, axis=0))
    return jnp.stack(outs, axis=0)


if __name__ == "__main__":
    key = jax.random.PRNGKey(0)
    k1, k2, k3, k4, k5, k6 = jax.random.split(key, 6)

    B = 2          # batch (audio samples)
    N = 256        # total image rows available
    D_AUDIO = 128  # audio feature dim
    D_IMAGE = 128  # image feature dim
    C = 16         # number of classes (padded to 128 lanes inside the kernel)

    params = {
        "wa": jax.random.normal(k1, (D_AUDIO, C), jnp.float32) * 0.1,
        "ba": jax.random.normal(k2, (1, C), jnp.float32) * 0.1,
        "wi": jax.random.normal(k3, (D_IMAGE, C), jnp.float32) * 0.1,
        "bi": jax.random.normal(k4, (1, C), jnp.float32) * 0.1,
    }

    audio_x = jax.random.normal(k5, (B, D_AUDIO), jnp.float32)
    image_x = jax.random.normal(k6, (N, D_IMAGE), jnp.float32)
    nums = jnp.array([100, 156], dtype=jnp.int32)   # images voting per sample

    out = majority_voting_forward(audio_x, image_x, nums, params)
    out = jax.block_until_ready(out)

    ref = reference_forward(audio_x, image_x, nums, params)
    assert out.shape == (B, C)
    max_err = jnp.max(jnp.abs(out - ref))
    # bf16 MXU inputs + approx reciprocal vs the f32 reference -> loosened tol.
    assert jnp.allclose(out, ref, atol=3e-2, rtol=3e-2), (
        f"mismatch vs reference (max abs err {max_err})")

    print("KERNEL_OK")
</pallas_src>

<mosaic_0001>
module attributes {stable_mosaic.version = 11 : i64} {
  func.func @_fused_vote_kernel(%arg0: i32, %arg1: memref<2xi32, #tpu.memory_space<smem>>, %arg2: memref<2x128xbf16, #tpu.memory_space<vmem>>, %arg3: memref<128x128xbf16, #tpu.memory_space<vmem>>, %arg4: memref<1x128xf32, #tpu.memory_space<vmem>>, %arg5: memref<128x128xbf16, #tpu.memory_space<vmem>>, %arg6: memref<128x128xbf16, #tpu.memory_space<vmem>>, %arg7: memref<1x128xf32, #tpu.memory_space<vmem>>, %arg8: memref<2x128xf32, #tpu.memory_space<vmem>>, %arg9: memref<2x128xf32, #tpu.memory_space<vmem>>) attributes {dimension_semantics = [#tpu.dimension_semantics<arbitrary>], iteration_bounds = array<i64: 2>, scalar_prefetch = 1 : i64, scratch_operands = 1 : i64, tpu.core_type = #tpu.core_type<tc>, window_params = [{pipeline_mode = #tpu.pipeline_mode<synchronous>, transform_indices = @transform_0, window_bounds = array<i64: 2, 128>}, {pipeline_mode = #tpu.pipeline_mode<synchronous>, transform_indices = @transform_1, window_bounds = array<i64: 128, 128>}, {pipeline_mode = #tpu.pipeline_mode<synchronous>, transform_indices = @transform_2, window_bounds = array<i64: 1, 128>}, {transform_indices = @transform_3, window_bounds = array<i64: 128, 128>}, {pipeline_mode = #tpu.pipeline_mode<synchronous>, transform_indices = @transform_4, window_bounds = array<i64: 128, 128>}, {pipeline_mode = #tpu.pipeline_mode<synchronous>, transform_indices = @transform_5, window_bounds = array<i64: 1, 128>}, {pipeline_mode = #tpu.pipeline_mode<synchronous>, transform_indices = @transform_6, window_bounds = array<i64: 2, 128>}]} {
    %c0_i32 = arith.constant 0 : i32
    %0 = arith.cmpi eq, %arg0, %c0_i32 : i32
    %1 = arith.extui %0 : i1 to i32
    %c0_i32_0 = arith.constant 0 : i32
    %2 = arith.cmpi ne, %1, %c0_i32_0 : i32
    scf.if %2 {
      %cst = arith.constant 0.000000e+00 : f32
      %13 = vector.broadcast %cst : f32 to vector<2x128xf32>
      %c0_3 = arith.constant 0 : index
      %c0_4 = arith.constant 0 : index
      %14 = vector.load %arg9[%c0_3, %c0_4] : memref<2x128xf32, #tpu.memory_space<vmem>>, vector<2x128xf32>
      tpu.vector_store %arg9[%c0_3, %c0_4], %13 {strides = array<i32>} : memref<2x128xf32, #tpu.memory_space<vmem>>, vector<2x128xf32>,
    } else {
    }
    %c0 = arith.constant 0 : index
    %3 = memref.load %arg1[%c0] : memref<2xi32, #tpu.memory_space<smem>>
    %c1 = arith.constant 1 : index
    %4 = memref.load %arg1[%c1] : memref<2xi32, #tpu.memory_space<smem>>
    %5 = arith.maxsi %3, %4 : i32
    %c128_i32 = arith.constant 128 : i32
    %6 = arith.muli %arg0, %c128_i32 : i32
    %7 = arith.cmpi slt, %6, %5 : i32
    %8 = arith.extui %7 : i1 to i32
    %c0_i32_1 = arith.constant 0 : i32
    %9 = arith.cmpi ne, %8, %c0_i32_1 : i32
    scf.if %9 {
      %c0_3 = arith.constant 0 : index
      %c0_4 = arith.constant 0 : index
      %13 = vector.load %arg5[%c0_3, %c0_4] : memref<128x128xbf16, #tpu.memory_space<vmem>>, vector<128x128xbf16>
      %c0_5 = arith.constant 0 : index
      %c0_6 = arith.constant 0 : index
      %14 = vector.load %arg6[%c0_5, %c0_6] : memref<128x128xbf16, #tpu.memory_space<vmem>>, vector<128x128xbf16>
      %cst = arith.constant dense<0.000000e+00> : vector<128x128xf32>
      %15 = tpu.matmul %13, %14, %cst {dimension_numbers = #tpu.dot_dimension_numbers<[1], [0], [0], [1], [0, 0, 1, 1], [], []>} : vector<128x128xbf16>, vector<128x128xbf16>, vector<128x128xf32> -> vector<128x128xf32>
      %c0_7 = arith.constant 0 : index
      %c0_8 = arith.constant 0 : index
      %16 = vector.load %arg7[%c0_7, %c0_8] : memref<1x128xf32, #tpu.memory_space<vmem>>, vector<1x128xf32>
      %17 = vector.broadcast %16 : vector<1x128xf32> to vector<128x128xf32>
      %18 = arith.addf %15, %17 : vector<128x128xf32>
      %19 = tpu.iota {dimensions = array<i32: 0>} : vector<128x1xi32>
      %20 = vector.broadcast %6 : i32 to vector<128x1xi32>
      %21 = arith.addi %20, %19 : vector<128x1xi32>
      %c0_9 = arith.constant 0 : index
      %22 = memref.load %arg1[%c0_9] : memref<2xi32, #tpu.memory_space<smem>>
      %23 = vector.broadcast %22 : i32 to vector<128x1xi32>
      %24 = arith.cmpi slt, %21, %23 : vector<128x1xi32>
      %25 = arith.extui %24 : vector<128x1xi1> to vector<128x1xi32>
      %26 = arith.sitofp %25 : vector<128x1xi32> to vector<128x1xf32>
      %c0_10 = arith.constant 0 : index
      %c0_11 = arith.constant 0 : index
      %27 = vector.load %arg9[%c0_10, %c0_11] : memref<2x128xf32, #tpu.memory_space<vmem>>, vector<1x128xf32>
      %28 = vector.broadcast %26 : vector<128x1xf32> to vector<128x128xf32>
      %29 = arith.mulf %18, %28 : vector<128x128xf32>
      %cst_12 = arith.constant dense<0.000000e+00> : vector<128xf32>
      %30 = vector.multi_reduction <add>, %29, %cst_12 [0] : vector<128x128xf32> to vector<128xf32>
      %31 = vector.shape_cast %30 : vector<128xf32> to vector<1x128xf32>
      %32 = arith.addf %27, %31 : vector<1x128xf32>
      %c0_13 = arith.constant 0 : index
      %c0_14 = arith.constant 0 : index
      %33 = vector.load %arg9[%c0_13, %c0_14] : memref<2x128xf32, #tpu.memory_space<vmem>>, vector<1x128xf32>
      tpu.vector_store %arg9[%c0_13, %c0_14], %32 {strides = array<i32>} : memref<2x128xf32, #tpu.memory_space<vmem>>, vector<1x128xf32>,
      %c1_15 = arith.constant 1 : index
      %34 = memref.load %arg1[%c1_15] : memref<2xi32, #tpu.memory_space<smem>>
      %35 = vector.broadcast %34 : i32 to vector<128x1xi32>
      %36 = arith.cmpi slt, %21, %35 : vector<128x1xi32>
      %37 = arith.extui %36 : vector<128x1xi1> to vector<128x1xi32>
      %38 = arith.sitofp %37 : vector<128x1xi32> to vector<128x1xf32>
      %c1_16 = arith.constant 1 : index
      %c0_17 = arith.constant 0 : index
      %39 = vector.load %arg9[%c1_16, %c0_17] : memref<2x128xf32, #tpu.memory_space<vmem>>, vector<1x128xf32>
      %40 = vector.broadcast %38 : vector<128x1xf32> to vector<128x128xf32>
      %41 = arith.mulf %18, %40 : vector<128x128xf32>
      %cst_18 = arith.constant dense<0.000000e+00> : vector<128xf32>
      %42 = vector.multi_reduction <add>, %41, %cst_18 [0] : vector<128x128xf32> to vector<128xf32>
      %43 = vector.shape_cast %42 : vector<128xf32> to vector<1x128xf32>
      %44 = arith.addf %39, %43 : vector<1x128xf32>
      %c1_19 = arith.constant 1 : index
      %c0_20 = arith.constant 0 : index
      %45 = vector.load %arg9[%c1_19, %c0_20] : memref<2x128xf32, #tpu.memory_space<vmem>>, vector<1x128xf32>
      tpu.vector_store %arg9[%c1_19, %c0_20], %44 {strides = array<i32>} : memref<2x128xf32, #tpu.memory_space<vmem>>, vector<1x128xf32>,
    } else {
    }
    %c1_i32 = arith.constant 1 : i32
    %10 = arith.cmpi eq, %arg0, %c1_i32 : i32
    %11 = arith.extui %10 : i1 to i32
    %c0_i32_2 = arith.constant 0 : i32
    %12 = arith.cmpi ne, %11, %c0_i32_2 : i32
    scf.if %12 {
      %c0_3 = arith.constant 0 : index
      %c0_4 = arith.constant 0 : index
      %13 = vector.load %arg2[%c0_3, %c0_4] : memref<2x128xbf16, #tpu.memory_space<vmem>>, vector<2x128xbf16>
      %c0_5 = arith.constant 0 : index
      %c0_6 = arith.constant 0 : index
      %14 = vector.load %arg3[%c0_5, %c0_6] : memref<128x128xbf16, #tpu.memory_space<vmem>>, vector<128x128xbf16>
      %cst = arith.constant dense<0.000000e+00> : vector<2x128xf32>
      %15 = tpu.matmul %13, %14, %cst {dimension_numbers = #tpu.dot_dimension_numbers<[1], [0], [0], [1], [0, 0, 1, 1], [], []>} : vector<2x128xbf16>, vector<128x128xbf16>, vector<2x128xf32> -> vector<2x128xf32>
      %c0_7 = arith.constant 0 : index
      %c0_8 = arith.constant 0 : index
      %16 = vector.load %arg4[%c0_7, %c0_8] : memref<1x128xf32, #tpu.memory_space<vmem>>, vector<1x128xf32>
      %17 = vector.broadcast %16 : vector<1x128xf32> to vector<2x128xf32>
      %18 = arith.addf %15, %17 : vector<2x128xf32>
      %19 = tpu.iota {dimensions = array<i32: 0>} : vector<2x1xi32>
      %cst_9 = arith.constant 1.000000e+00 : f32
      %20 = vector.broadcast %cst_9 : f32 to vector<2x1xf32>
      %c0_i32_10 = arith.constant 0 : i32
      %21 = vector.broadcast %c0_i32_10 : i32 to vector<2x1xi32>
      %22 = arith.cmpi eq, %19, %21 : vector<2x1xi32>
      %c0_11 = arith.constant 0 : index
      %23 = memref.load %arg1[%c0_11] : memref<2xi32, #tpu.memory_space<smem>>
      %24 = arith.sitofp %23 : i32 to f32
      %cst_12 = arith.constant 0.000000e+00 : f32
      %25 = vector.broadcast %24 : f32 to vector<2x1xf32>
      %26 = vector.broadcast %cst_12 : f32 to vector<2x1xf32>
      %27 = arith.select %22, %25, %26 : vector<2x1xi1>, vector<2x1xf32>
      %28 = arith.addf %20, %27 : vector<2x1xf32>
      %c1_i32_13 = arith.constant 1 : i32
      %29 = vector.broadcast %c1_i32_13 : i32 to vector<2x1xi32>
      %30 = arith.cmpi eq, %19, %29 : vector<2x1xi32>
      %c1_14 = arith.constant 1 : index
      %31 = memref.load %arg1[%c1_14] : memref<2xi32, #tpu.memory_space<smem>>
      %32 = arith.sitofp %31 : i32 to f32
      %cst_15 = arith.constant 0.000000e+00 : f32
      %33 = vector.broadcast %32 : f32 to vector<2x1xf32>
      %34 = vector.broadcast %cst_15 : f32 to vector<2x1xf32>
      %35 = arith.select %30, %33, %34 : vector<2x1xi1>, vector<2x1xf32>
      %36 = arith.addf %28, %35 : vector<2x1xf32>
      %37 = tpu.reciprocal %36 {approx = true} : vector<2x1xf32> -> vector<2x1xf32>
      %c0_16 = arith.constant 0 : index
      %c0_17 = arith.constant 0 : index
      %38 = vector.load %arg9[%c0_16, %c0_17] : memref<2x128xf32, #tpu.memory_space<vmem>>, vector<2x128xf32>
      %39 = arith.addf %38, %18 : vector<2x128xf32>
      %40 = vector.broadcast %37 : vector<2x1xf32> to vector<2x128xf32>
      %41 = arith.mulf %39, %40 : vector<2x128xf32>
      %c0_18 = arith.constant 0 : index
      %c0_19 = arith.constant 0 : index
      %42 = vector.load %arg8[%c0_18, %c0_19] : memref<2x128xf32, #tpu.memory_space<vmem>>, vector<2x128xf32>
      tpu.vector_store %arg8[%c0_18, %c0_19], %41 {strides = array<i32>} : memref<2x128xf32, #tpu.memory_space<vmem>>, vector<2x128xf32>,
    } else {
    }
    return
  }
  func.func @transform_0(%arg0: i32, %arg1: memref<2xi32, #tpu.memory_space<smem>>) -> (i32, i32) {
    %c0_i32 = arith.constant 0 : i32
    %c0_i32_0 = arith.constant 0 : i32
    %c0_i32_1 = arith.constant 0 : i32
    return %c0_i32, %c0_i32_0 : i32, i32
  }
  func.func @transform_1(%arg0: i32, %arg1: memref<2xi32, #tpu.memory_space<smem>>) -> (i32, i32) {
    %c0_i32 = arith.constant 0 : i32
    %c0_i32_0 = arith.constant 0 : i32
    %c0_i32_1 = arith.constant 0 : i32
    return %c0_i32, %c0_i32_0 : i32, i32
  }
  func.func @transform_2(%arg0: i32, %arg1: memref<2xi32, #tpu.memory_space<smem>>) -> (i32, i32) {
    %c0_i32 = arith.constant 0 : i32
    %c0_i32_0 = arith.constant 0 : i32
    %c0_i32_1 = arith.constant 0 : i32
    return %c0_i32, %c0_i32_0 : i32, i32
  }
  func.func @transform_3(%arg0: i32, %arg1: memref<2xi32, #tpu.memory_space<smem>>) -> (i32, i32) {
    %c0_i32 = arith.constant 0 : i32
    %c0_i32_0 = arith.constant 0 : i32
    return %arg0, %c0_i32 : i32, i32
  }
  func.func @transform_4(%arg0: i32, %arg1: memref<2xi32, #tpu.memory_space<smem>>) -> (i32, i32) {
    %c0_i32 = arith.constant 0 : i32
    %c0_i32_0 = arith.constant 0 : i32
    %c0_i32_1 = arith.constant 0 : i32
    return %c0_i32, %c0_i32_0 : i32, i32
  }
  func.func @transform_5(%arg0: i32, %arg1: memref<2xi32, #tpu.memory_space<smem>>) -> (i32, i32) {
    %c0_i32 = arith.constant 0 : i32
    %c0_i32_0 = arith.constant 0 : i32
    %c0_i32_1 = arith.constant 0 : i32
    return %c0_i32, %c0_i32_0 : i32, i32
  }
  func.func @transform_6(%arg0: i32, %arg1: memref<2xi32, #tpu.memory_space<smem>>) -> (i32, i32) {
    %c0_i32 = arith.constant 0 : i32
    %c0_i32_0 = arith.constant 0 : i32
    %c0_i32_1 = arith.constant 0 : i32
    return %c0_i32, %c0_i32_0 : i32, i32
  }
}

</mosaic_0001>

<llo_original>
// kernel: tpu_custom_call.1
$region0: #{tpu_custom_call.1}
  #allocation0 [shape = 'u32[]', space=smem, size = 0x4, offset = 0x4, fixed_abs, tag = 'smem constant byte address 0x4 - core index']
  #allocation1 [shape = 'u32[144,128]{1,0:T(1,128)}', space=vmem, size = 0x12000, scoped, tag = 'internal scratch']
  #allocation2 [shape = 'f32[2,128]{1,0:T(2,128)}', space=vmem, size = 0x400, scoped, tag = 'scratch operand']
  #allocation3 [shape = 's32[1]{0}', space=sflag, size = 0x4, scoped, tag = 'scoped memory for tpu_custom_call.1']
  #allocation4 [shape = 'u8[512]{0}', space=smem, size = 0x200, scoped, tag = 'prefetched SMEM operand 0']
  %s0 = inlined_call_operand.hbm [shape: s32[2], index: 0, kind: input, shape index: {}]
  %s1 = inlined_call_operand.vmem [shape: bf16[2,128], index: 1, kind: input, shape index: {}]
  %s2 = inlined_call_operand.hbm [shape: bf16[128,128], index: 2, kind: input, shape index: {}]
  %s3 = inlined_call_operand.vmem [shape: f32[1,128], index: 3, kind: input, shape index: {}]
  %s4 = inlined_call_operand.hbm [shape: bf16[256,128], index: 4, kind: input, shape index: {}]
  %s5 = inlined_call_operand.hbm [shape: bf16[128,128], index: 5, kind: input, shape index: {}]
  %s6 = inlined_call_operand.vmem [shape: f32[1,128], index: 6, kind: input, shape index: {}]
  %s7 = inlined_call_operand.hbm [shape: f32[2,128], index: 7, kind: output, shape index: {}]
  %s8 = sld [smem:[#allocation0]]
  $region81: #{tpu_custom_call.1} parent=0
    _
  %s10 = ssub.s32 1, %s8
  %s11 = scalar_select 0, %s10, %s8
  %13 = dma.hbm_to_smem %s0, 16, [#allocation4], [#allocation3]
  %14 = dma.done [#allocation3], 16
  %15 = sfence
  $region1: #{tpu_custom_call.1} parent=0
    #allocation5 [shape = 'u8[32768]{0}', space=vmem, size = 0x8000, scoped, tag = 'input window, operand 2, single buffered']
    #allocation6 [shape = 's32[2]{0}', space=sflag, size = 0x8, scoped, tag = 'scoped memory for tpu_custom_call.1']
    #allocation7 [shape = 's32[2]{0}', space=sflag, size = 0x8, scoped, tag = 'scoped memory for tpu_custom_call.1']
    #allocation8 [shape = 'u8[65536]{0}', space=vmem, size = 0x10000, scoped, tag = 'input window, operand 4']
    #allocation9 [shape = 's32[2]{0}', space=sflag, size = 0x8, scoped, tag = 'scoped memory for tpu_custom_call.1']
    #allocation10 [shape = 'u8[32768]{0}', space=vmem, size = 0x8000, scoped, tag = 'input window, operand 5, single buffered']
    #allocation11 [shape = 'u8[1024]{0}', space=vmem, size = 0x400, scoped, tag = 'output window, operand 0, single buffered']
    %16 = vsyncpa [#allocation6], 0
    %17 = vsyncpa [#allocation9], 0
    %s18 = scalar_lea.sflag [#allocation9], 1
    %19 = vsyncpa %s18, 0
    %20 = vsyncpa [#allocation7], 0
    loop: start=0, step=1, limit=4
    $region2: #{tpu_custom_call.1} parent=1 // loop_pre_header
      _
    $region3: #{tpu_custom_call.1} parent=1 // loop_header
      %s22 = sphi 0, %s26
      %p23 = scmp.ge.s32.totalorder %s22, 4
      %s30 = sphi 0, %s30
      %s32 = sphi 0, %s30
      %s33 = sphi 0, %s32
      %s47 = sphi 0, %s33
      %s51 = sphi 0, %s51
      %s53 = sphi 0, %s51
      %s54 = sphi 0, %s53
      %s68 = sphi 0, %s54
      %s72 = sphi 0, %s72
      %s74 = sphi 0, %s72
      %s75 = sphi 0, %s74
      %s89 = sphi 0, %s75
      %s95 = sphi 0, %s97
      %s98 = sphi 0, %s95
      %s99 = sphi 0, %s98
      %s115 = sphi 0, %s99
      %s119 = sphi 0, %s119
      %s121 = sphi 0, %s119
      %s122 = sphi 0, %s121
      %s136 = sphi 0, %s122
      %s140 = sphi 0, %s140
      %s142 = sphi 0, %s140
      %s143 = sphi 0, %s142
      %s157 = sphi 0, %s143
      %s161 = sphi 0, %s161
      %s163 = sphi 0, %s161
      %s164 = sphi 0, %s163
      %s178 = sphi 0, %s164
    $region4: #{tpu_custom_call.1} parent=1 // loop_header_branch
      %25 = sbr.rel (%p23) target = $region8
    $region5: #{tpu_custom_call.1} parent=1 // loop_body
      %s27 = ssub.s32 %s22, 1
      %s28 = ssub.s32 %s22, 2
      %s29 = sadd.s32 %s22, 1
      %s31 = sadd.s32 %s30, 1
      %p34 = scmp.eq.s32.totalorder %s22, 1
      %p35 = scmp.ne.s32.totalorder %s30, %s32
      %p36 = scmp.eq.s32.totalorder %s22, 0
      %p37 = por %p35, %p36
      %p38 = scmp.ne.s32.totalorder %s30, %s32
      %p39 = scmp.eq.s32.totalorder %s27, 1
      %p40 = por %p38, %p39
      %p41 = scmp.ne.s32.totalorder %s32, %s33
      %p42 = scmp.eq.s32.totalorder %s27, 0
      %p43 = por %p41, %p42
      %p44 = scmp.ne.s32.totalorder %s32, %s33
      %p45 = scmp.eq.s32.totalorder %s28, 1
      %p46 = por %p44, %p45
      %p48 = scmp.ne.s32.totalorder %s33, %s47
      %p49 = scmp.eq.s32.totalorder %s28, 0
      %p50 = por %p48, %p49
      %s52 = sadd.s32 %s51, 1
      %p55 = scmp.eq.s32.totalorder %s22, 1
      %p56 = scmp.ne.s32.totalorder %s51, %s53
      %p57 = scmp.eq.s32.totalorder %s22, 0
      %p58 = por %p56, %p57
      %p59 = scmp.ne.s32.totalorder %s51, %s53
      %p60 = scmp.eq.s32.totalorder %s27, 1
      %p61 = por %p59, %p60
      %p62 = scmp.ne.s32.totalorder %s53, %s54
      %p63 = scmp.eq.s32.totalorder %s27, 0
      %p64 = por %p62, %p63
      %p65 = scmp.ne.s32.totalorder %s53, %s54
      %p66 = scmp.eq.s32.totalorder %s28, 1
      %p67 = por %p65, %p66
      %p69 = scmp.ne.s32.totalorder %s54, %s68
      %p70 = scmp.eq.s32.totalorder %s28, 0
      %p71 = por %p69, %p70
      %s73 = sadd.s32 %s72, 1
      %p76 = scmp.eq.s32.totalorder %s22, 1
      %p77 = scmp.ne.s32.totalorder %s72, %s74
      %p78 = scmp.eq.s32.totalorder %s22, 0
      %p79 = por %p77, %p78
      %p80 = scmp.ne.s32.totalorder %s72, %s74
      %p81 = scmp.eq.s32.totalorder %s27, 1
      %p82 = por %p80, %p81
      %p83 = scmp.ne.s32.totalorder %s74, %s75
      %p84 = scmp.eq.s32.totalorder %s27, 0
      %p85 = por %p83, %p84
      %p86 = scmp.ne.s32.totalorder %s74, %s75
      %p87 = scmp.eq.s32.totalorder %s28, 1
      %p88 = por %p86, %p87
      %p90 = scmp.ne.s32.totalorder %s75, %s89
      %p91 = scmp.eq.s32.totalorder %s28, 0
      %p92 = por %p90, %p91
      %s93 = ssub.s32 %s22, %s29
      %p94 = scmp.eq.s32.totalorder %s93, 0
      %s96 = sadd.s32 %s95, 1
      %s97 = scalar_select %p94, %s95, %s96
      %p100 = pneg %p94
      %p101 = scmp.eq.s32.totalorder %s22, 1
      %p102 = por %p100, %p101
      %p103 = scmp.ne.s32.totalorder %s95, %s98
      %p104 = scmp.eq.s32.totalorder %s22, 0
      %p105 = por %p103, %p104
      %p106 = scmp.ne.s32.totalorder %s95, %s98
      %p107 = scmp.eq.s32.totalorder %s27, 1
      %p108 = por %p106, %p107
      %p109 = scmp.ne.s32.totalorder %s98, %s99
      %p110 = scmp.eq.s32.totalorder %s27, 0
      %p111 = por %p109, %p110
      %p112 = scmp.ne.s32.totalorder %s98, %s99
      %p113 = scmp.eq.s32.totalorder %s28, 1
      %p114 = por %p112, %p113
      %p116 = scmp.ne.s32.totalorder %s99, %s115
      %p117 = scmp.eq.s32.totalorder %s28, 0
      %p118 = por %p116, %p117
      %s120 = sadd.s32 %s119, 1
      %p123 = scmp.eq.s32.totalorder %s22, 1
      %p124 = scmp.ne.s32.totalorder %s119, %s121
      %p125 = scmp.eq.s32.totalorder %s22, 0
      %p126 = por %p124, %p125
      %p127 = scmp.ne.s32.totalorder %s119, %s121
      %p128 = scmp.eq.s32.totalorder %s27, 1
      %p129 = por %p127, %p128
      %p130 = scmp.ne.s32.totalorder %s121, %s122
      %p131 = scmp.eq.s32.totalorder %s27, 0
      %p132 = por %p130, %p131
      %p133 = scmp.ne.s32.totalorder %s121, %s122
      %p134 = scmp.eq.s32.totalorder %s28, 1
      %p135 = por %p133, %p134
      %p137 = scmp.ne.s32.totalorder %s122, %s136
      %p138 = scmp.eq.s32.totalorder %s28, 0
      %p139 = por %p137, %p138
      %s141 = sadd.s32 %s140, 1
      %p144 = scmp.eq.s32.totalorder %s22, 1
      %p145 = scmp.ne.s32.totalorder %s140, %s142
      %p146 = scmp.eq.s32.totalorder %s22, 0
      %p147 = por %p145, %p146
      %p148 = scmp.ne.s32.totalorder %s140, %s142
      %p149 = scmp.eq.s32.totalorder %s27, 1
      %p150 = por %p148, %p149
      %p151 = scmp.ne.s32.totalorder %s142, %s143
      %p152 = scmp.eq.s32.totalorder %s27, 0
      %p153 = por %p151, %p152
      %p154 = scmp.ne.s32.totalorder %s142, %s143
      %p155 = scmp.eq.s32.totalorder %s28, 1
      %p156 = por %p154, %p155
      %p158 = scmp.ne.s32.totalorder %s143, %s157
      %p159 = scmp.eq.s32.totalorder %s28, 0
      %p160 = por %p158, %p159
      %s162 = sadd.s32 %s161, 1
      %p165 = scmp.eq.s32.totalorder %s22, 1
      %p166 = scmp.ne.s32.totalorder %s161, %s163
      %p167 = scmp.eq.s32.totalorder %s22, 0
      %p168 = por %p166, %p167
      %p169 = scmp.ne.s32.totalorder %s161, %s163
      %p170 = scmp.eq.s32.totalorder %s27, 1
      %p171 = por %p169, %p170
      %p172 = scmp.ne.s32.totalorder %s163, %s164
      %p173 = scmp.eq.s32.totalorder %s27, 0
      %p174 = por %p172, %p173
      %p175 = scmp.ne.s32.totalorder %s163, %s164
      %p176 = scmp.eq.s32.totalorder %s28, 1
      %p177 = por %p175, %p176
      %p179 = scmp.ne.s32.totalorder %s164, %s178
      %p180 = scmp.eq.s32.totalorder %s28, 0
      %p181 = por %p179, %p180
      %p182 = scmp.le.s32.totalorder 1, %s22
      %p183 = scmp.lt.s32.totalorder %s22, 3
      %p184 = pnand %p182, %p183
      %p185 = pneg %p184
      // Predicated region
      $region9: #{tpu_custom_call.1} parent=5 // pred_check
        _
      $region10: #{tpu_custom_call.1} parent=5 // pred_check_branch
        %187 = sbr.rel (%p184) target = $region12
      $region11: #{tpu_custom_call.1} parent=5 // pred_region
        %s188 = ssub.s32 %s22, 1
        // Predicated region
        $region13: #{tpu_custom_call.1} parent=11 // pred_check
          %p189 = pneg %p43
        $region14: #{tpu_custom_call.1} parent=11 // pred_check_branch
          %191 = sbr.rel (%p189) target = $region16
        $region15: #{tpu_custom_call.1} parent=11 // pred_region
          _
        $region16: #{tpu_custom_call.1} parent=11 // pred_fallthru
          _
        // Predicated region
        $region17: #{tpu_custom_call.1} parent=11 // pred_check
          %p192 = pneg %p64
        $region18: #{tpu_custom_call.1} parent=11 // pred_check_branch
          %194 = sbr.rel (%p192) target = $region20
        $region19: #{tpu_custom_call.1} parent=11 // pred_region
          %s196 = ssub.s32 1024, 1024
          %197 = vsyncadd [#allocation6], %s196
          %s198 = sshll.u32 [#allocation5], 4
          %s199 = int_to_ptr.vmem [resolvable:$true] %s198
          %204 = dma.hbm_to_vmem [thread:$0]  %s2, 1024, %s199, [#allocation6], 64, 64, 4
        $region20: #{tpu_custom_call.1} parent=11 // pred_fallthru
          _
        // Predicated region
        $region21: #{tpu_custom_call.1} parent=11 // pred_check
          %p205 = pneg %p85
        $region22: #{tpu_custom_call.1} parent=11 // pred_check_branch
          %207 = sbr.rel (%p205) target = $region24
        $region23: #{tpu_custom_call.1} parent=11 // pred_region
          _
        $region24: #{tpu_custom_call.1} parent=11 // pred_fallthru
          _
        // Predicated region
        $region25: #{tpu_custom_call.1} parent=11 // pred_check
          %p208 = pneg %p132
        $region26: #{tpu_custom_call.1} parent=11 // pred_check_branch
          %210 = sbr.rel (%p208) target = $region28
        $region27: #{tpu_custom_call.1} parent=11 // pred_region
          %s212 = ssub.s32 1024, 1024
          %213 = vsyncadd [#allocation9], %s212
          %s214 = sshll.u32 [#allocation10], 4
          %s215 = int_to_ptr.vmem [resolvable:$true] %s214
          %220 = dma.hbm_to_vmem [thread:$0]  %s5, 1024, %s215, [#allocation9], 64, 64, 4
        $region28: #{tpu_custom_call.1} parent=11 // pred_fallthru
          _
        // Predicated region
        $region29: #{tpu_custom_call.1} parent=11 // pred_check
          %p221 = pneg %p153
        $region30: #{tpu_custom_call.1} parent=11 // pred_check_branch
          %223 = sbr.rel (%p221) target = $region32
        $region31: #{tpu_custom_call.1} parent=11 // pred_region
          _
        $region32: #{tpu_custom_call.1} parent=11 // pred_fallthru
          _
      $region12: #{tpu_custom_call.1} parent=5 // pred_fallthru
        _
      %p224 = scmp.lt.s32.totalorder %s22, 2
      // Predicated region
      $region33: #{tpu_custom_call.1} parent=5 // pred_check
        %p225 = pneg %p224
      $region34: #{tpu_custom_call.1} parent=5 // pred_check_branch
        %227 = sbr.rel (%p225) target = $region36
      $region35: #{tpu_custom_call.1} parent=5 // pred_region
        // Predicated region
        $region37: #{tpu_custom_call.1} parent=35 // pred_check
          %p228 = pneg %p105
        $region38: #{tpu_custom_call.1} parent=35 // pred_check_branch
          %230 = sbr.rel (%p228) target = $region40
        $region39: #{tpu_custom_call.1} parent=35 // pred_region
          %s231 = sand.u32 %s22, 1
          %s232 = scalar_lea.sflag [#allocation9], %s231
          %s233 = sand.u32 %s95, 1
          %s234 = smul.addr %s233, 64
          %s235 = scalar_lea.vmem [#allocation8], %s234
          %s236 = smul.u32 16, %s22
          %s238 = ssub.s32 1024, 1024
          %239 = vsyncadd %s232, %s238
          %s240 = smul.addr %s236, 64
          %s241 = scalar_lea.hbm %s4, %s240
          %s242 = sshll.u32 %s235, 4
          %s243 = int_to_ptr.vmem [resolvable:$true] %s242
          %248 = dma.hbm_to_vmem [thread:$0]  %s241, 1024, %s243, %s232, 64, 64, 4
        $region40: #{tpu_custom_call.1} parent=35 // pred_fallthru
          _
      $region36: #{tpu_custom_call.1} parent=5 // pred_fallthru
        _
      %p249 = scmp.le.s32.totalorder 1, %s22
      %p250 = scmp.lt.s32.totalorder %s22, 3
      %p251 = pnand %p249, %p250
      %p252 = pneg %p251
      // Predicated region
      $region41: #{tpu_custom_call.1} parent=5 // pred_check
        _
      $region42: #{tpu_custom_call.1} parent=5 // pred_check_branch
        %254 = sbr.rel (%p251) target = $region44
      $region43: #{tpu_custom_call.1} parent=5 // pred_region
        %s255 = ssub.s32 %s22, 1
        // Predicated region
        $region45: #{tpu_custom_call.1} parent=43 // pred_check
          %p256 = pneg %p64
        $region46: #{tpu_custom_call.1} parent=43 // pred_check_branch
          %258 = sbr.rel (%p256) target = $region48
        $region47: #{tpu_custom_call.1} parent=43 // pred_region
          %259 = dma.done [#allocation6], 1024
        $region48: #{tpu_custom_call.1} parent=43 // pred_fallthru
          _
        %s260 = sand.u32 %s27, 1
        %s261 = scalar_lea.sflag [#allocation9], %s260
        %s262 = sand.u32 %s98, 1
        %s263 = smul.addr %s262, 64
        %s264 = scalar_lea.vmem [#allocation8], %s263
        // Predicated region
        $region49: #{tpu_custom_call.1} parent=43 // pred_check
          %p265 = pneg %p111
        $region50: #{tpu_custom_call.1} parent=43 // pred_check_branch
          %267 = sbr.rel (%p265) target = $region52
        $region51: #{tpu_custom_call.1} parent=43 // pred_region
          %268 = dma.done %s261, 1024
        $region52: #{tpu_custom_call.1} parent=43 // pred_fallthru
          _
        // Predicated region
        $region53: #{tpu_custom_call.1} parent=43 // pred_check
          %p269 = pneg %p132
        $region54: #{tpu_custom_call.1} parent=43 // pred_check_branch
          %271 = sbr.rel (%p269) target = $region56
        $region55: #{tpu_custom_call.1} parent=43 // pred_region
          %272 = dma.done [#allocation9], 1024
        $region56: #{tpu_custom_call.1} parent=43 // pred_fallthru
          _
        %p273 = pneg %p43
        %p274 = pneg %p40
        %p275 = pneg %p64
        %p276 = pneg %p61
        %p277 = pneg %p85
        %p278 = pneg %p82
        %s279 = sand.u32 %s27, 1
        %s280 = scalar_lea.sflag [#allocation9], %s279
        %s281 = sand.u32 %s98, 1
        %s282 = smul.addr %s281, 64
        %s283 = scalar_lea.vmem [#allocation8], %s282
        %p284 = pneg %p111
        %p285 = pneg %p108
        %p286 = pneg %p132
        %p287 = pneg %p129
        %p288 = pneg %p153
        %p289 = pneg %p150
        %p290 = pneg %p174
        %p291 = pneg %p171
        %s292 = smul.u32 16, %s27
        %p294 = scmp.eq.s32.totalorder %s27, 0
        // Predicated region
        $region57: #{tpu_custom_call.1} parent=43 // pred_check
          %p295 = pneg %p294
        $region58: #{tpu_custom_call.1} parent=43 // pred_check_branch
          %297 = sbr.rel (%p295) target = $region60
        $region59: #{tpu_custom_call.1} parent=43 // pred_region
          %298 = vst [vmem:[#allocation2] sm:$0x3] 0.0
        $region60: #{tpu_custom_call.1} parent=43 // pred_fallthru
          _
        %s299 = sld [smem:[#allocation4]]
        %s300 = sld [smem:[#allocation4 + $0x1]]
        %p301 = scmp.gt.s32.totalorder %s299, %s300
        %s302 = scalar_select %p301, %s299, %s300
        %s303 = smul.u32 %s27, 128
        %p304 = scmp.lt.s32.totalorder %s303, %s302
        // Predicated region
        $region61: #{tpu_custom_call.1} parent=43 // pred_check
          %p305 = pneg %p304
        $region62: #{tpu_custom_call.1} parent=43 // pred_check_branch
          %307 = sbr.rel (%p305) target = $region64
        $region63: #{tpu_custom_call.1} parent=43 // pred_region
          %v308 = vld [vmem:[%s264] sm:$0xf]
          %v309 = vld [vmem:[%s264 + $0x4] sm:$0xf]
          %v310 = vld [vmem:[%s264 + $0x8] sm:$0xf]
          %v311 = vld [vmem:[%s264 + $0xc] sm:$0xf]
          %v312 = vld [vmem:[%s264 + $0x10] sm:$0xf]
          %v313 = vld [vmem:[%s264 + $0x14] sm:$0xf]
          %v314 = vld [vmem:[%s264 + $0x18] sm:$0xf]
          %v315 = vld [vmem:[%s264 + $0x1c] sm:$0xf]
          %v316 = vld [vmem:[%s264 + $0x20] sm:$0xf]
          %v317 = vld [vmem:[%s264 + $0x24] sm:$0xf]
          %v318 = vld [vmem:[%s264 + $0x28] sm:$0xf]
          %v319 = vld [vmem:[%s264 + $0x2c] sm:$0xf]
          %v320 = vld [vmem:[%s264 + $0x30] sm:$0xf]
          %v321 = vld [vmem:[%s264 + $0x34] sm:$0xf]
          %v322 = vld [vmem:[%s264 + $0x38] sm:$0xf]
          %v323 = vld [vmem:[%s264 + $0x3c] sm:$0xf]
          %v324 = vld [vmem:[#allocation10] sm:$0xf]
          %v325 = vld [vmem:[#allocation10 + $0x4] sm:$0xf]
          %v326 = vld [vmem:[#allocation10 + $0x8] sm:$0xf]
          %v327 = vld [vmem:[#allocation10 + $0xc] sm:$0xf]
          %v328 = vld [vmem:[#allocation10 + $0x10] sm:$0xf]
          %v329 = vld [vmem:[#allocation10 + $0x14] sm:$0xf]
          %v330 = vld [vmem:[#allocation10 + $0x18] sm:$0xf]
          %v331 = vld [vmem:[#allocation10 + $0x1c] sm:$0xf]
          %v332 = vld [vmem:[#allocation10 + $0x20] sm:$0xf]
          %v333 = vld [vmem:[#allocation10 + $0x24] sm:$0xf]
          %v334 = vld [vmem:[#allocation10 + $0x28] sm:$0xf]
          %v335 = vld [vmem:[#allocation10 + $0x2c] sm:$0xf]
          %v336 = vld [vmem:[#allocation10 + $0x30] sm:$0xf]
          %v337 = vld [vmem:[#allocation10 + $0x34] sm:$0xf]
          %v338 = vld [vmem:[#allocation10 + $0x38] sm:$0xf]
          %v339 = vld [vmem:[#allocation10 + $0x3c] sm:$0xf]
          %v340 = vld [vmem:[%s6] sm:$0x1]
          %v342 = vlaneseq
          %v343 = vshrl.u32 %v342, 7
          %v344 = vsub.s32 0, %v343
          %v345 = vrot.slane %v340, %v344
          %v363 = vunpack.c.l.b16 %v308
          %v364 = vunpack.c.l.b16 %v309
          %v365 = vunpack.c.l.b16 %v310
          %v366 = vunpack.c.l.b16 %v311
          %v367 = vunpack.c.l.b16 %v312
          %v368 = vunpack.c.l.b16 %v313
          %v369 = vunpack.c.l.b16 %v314
          %v370 = vunpack.c.l.b16 %v315
          %v371 = vunpack.c.l.b16 %v316
          %v372 = vunpack.c.l.b16 %v317
          %v373 = vunpack.c.l.b16 %v318
          %v374 = vunpack.c.l.b16 %v319
          %v375 = vunpack.c.l.b16 %v320
          %v376 = vunpack.c.l.b16 %v321
          %v377 = vunpack.c.l.b16 %v322
          %v378 = vunpack.c.l.b16 %v323
          %v379 = vpack.c.b16 %v364, %v363
          %v380 = vpack.c.b16 %v366, %v365
          %v381 = vpack.c.b16 %v368, %v367
          %v382 = vpack.c.b16 %v370, %v369
          %v383 = vpack.c.b16 %v372, %v371
          %v384 = vpack.c.b16 %v374, %v373
          %v385 = vpack.c.b16 %v376, %v375
          %v386 = vpack.c.b16 %v378, %v377
          %v411 = vunpack.c.l.b16 %v324
          %v412 = vunpack.c.l.b16 %v325
          %v413 = vunpack.c.l.b16 %v326
          %v414 = vunpack.c.l.b16 %v327
          %v415 = vunpack.c.l.b16 %v328
          %v416 = vunpack.c.l.b16 %v329
          %v417 = vunpack.c.l.b16 %v330
          %v418 = vunpack.c.l.b16 %v331
          %v419 = vunpack.c.l.b16 %v332
          %v420 = vunpack.c.l.b16 %v333
          %v421 = vunpack.c.l.b16 %v334
          %v422 = vunpack.c.l.b16 %v335
          %v423 = vunpack.c.l.b16 %v336
          %v424 = vunpack.c.l.b16 %v337
          %v425 = vunpack.c.l.b16 %v338
          %v426 = vunpack.c.l.b16 %v339
          %v427 = vpack.c.b16 %v412, %v411
          %v428 = vpack.c.b16 %v414, %v413
          %v429 = vpack.c.b16 %v416, %v415
          %v430 = vpack.c.b16 %v418, %v417
          %v431 = vpack.c.b16 %v420, %v419
          %v432 = vpack.c.b16 %v422, %v421
          %v433 = vpack.c.b16 %v424, %v423
          %v434 = vpack.c.b16 %v426, %v425
          %443 = vmatprep.subr.bf16.mxu0 0
          %444 = vmatpush1.bf16.msra.mxu0 %v427
          %445 = vmatprep.subr.bf16.mxu0 0
          %446 = vmatpush1.bf16.msra.mxu0 %v428
          %447 = vmatprep.subr.bf16.mxu0 0
          %448 = vmatpush1.bf16.msra.mxu0 %v429
          %449 = vmatprep.subr.bf16.mxu0 0
          %450 = vmatpush1.bf16.msra.mxu0 %v430
          %451 = vmatprep.subr.bf16.mxu0 0
          %452 = vmatpush1.bf16.msra.mxu0 %v431
          %453 = vmatprep.subr.bf16.mxu0 0
          %454 = vmatpush1.bf16.msra.mxu0 %v432
          %455 = vmatprep.subr.bf16.mxu0 0
          %456 = vmatpush1.bf16.msra.mxu0 %v433
          %457 = vmatprep.subr.bf16.mxu0 0
          %458 = vmatpush1.bf16.msra.mxu0 %v434
          %459 = vmatprep.subr.bf16.mxu0 0
          %460 = vmatpush1.bf16.msra.mxu0 0
          %461 = vmatprep.subr.bf16.mxu0 0
          %462 = vmatpush1.bf16.msra.mxu0 0
          %463 = vmatprep.subr.bf16.mxu0 0
          %464 = vmatpush1.bf16.msra.mxu0 0
          %465 = vmatprep.subr.bf16.mxu0 0
          %466 = vmatpush1.bf16.msra.mxu0 0
          %467 = vmatprep.subr.bf16.mxu0 0
          %468 = vmatpush1.bf16.msra.mxu0 0
          %469 = vmatprep.subr.bf16.mxu0 0
          %470 = vmatpush1.bf16.msra.mxu0 0
          %471 = vmatprep.subr.bf16.mxu0 0
          %472 = vmatpush1.bf16.msra.mxu0 0
          %473 = vmatprep.subr.bf16.mxu0 0
          %474 = vmatpush1.bf16.msra.mxu0 0
          %475 = vmatprep.mubr.bf16.mxu0 0
          %476 = vmatmul.mubr.bf16.gmra.mrb[0].mxu0 %v379
          %v477 = vpop.f32.mrb[0].mxu0
          %v478 = vadd.f32 %v345, %v477
          %v479 = vpop.f32.mrb[0].mxu0
          %v480 = vpop.f32.mrb[0].mxu0
          %v481 = vadd.f32 %v345, %v480
          %v482 = vpop.f32.mrb[0].mxu0
          %483 = vmatprep.mubr.bf16.mxu0 0
          %484 = vmatmul.mubr.bf16.gmra.mrb[0].mxu0 %v380
          %v485 = vpop.f32.mrb[0].mxu0
          %v486 = vadd.f32 %v345, %v485
          %v487 = vpop.f32.mrb[0].mxu0
          %v488 = vpop.f32.mrb[0].mxu0
          %v489 = vadd.f32 %v345, %v488
          %v490 = vpop.f32.mrb[0].mxu0
          %491 = vmatprep.mubr.bf16.mxu0 0
          %492 = vmatmul.mubr.bf16.gmra.mrb[0].mxu0 %v381
          %v493 = vpop.f32.mrb[0].mxu0
          %v494 = vadd.f32 %v345, %v493
          %v495 = vpop.f32.mrb[0].mxu0
          %v496 = vpop.f32.mrb[0].mxu0
          %v497 = vadd.f32 %v345, %v496
          %v498 = vpop.f32.mrb[0].mxu0
          %499 = vmatprep.mubr.bf16.mxu0 0
          %500 = vmatmul.mubr.bf16.gmra.mrb[0].mxu0 %v382
          %v501 = vpop.f32.mrb[0].mxu0
          %v502 = vadd.f32 %v345, %v501
          %v503 = vpop.f32.mrb[0].mxu0
          %v504 = vpop.f32.mrb[0].mxu0
          %v505 = vadd.f32 %v345, %v504
          %v506 = vpop.f32.mrb[0].mxu0
          %507 = vmatprep.mubr.bf16.mxu0 0
          %508 = vmatmul.mubr.bf16.gmra.mrb[0].mxu0 %v383
          %v509 = vpop.f32.mrb[0].mxu0
          %v510 = vadd.f32 %v345, %v509
          %v511 = vpop.f32.mrb[0].mxu0
          %v512 = vpop.f32.mrb[0].mxu0
          %v513 = vadd.f32 %v345, %v512
          %v514 = vpop.f32.mrb[0].mxu0
          %515 = vmatprep.mubr.bf16.mxu0 0
          %516 = vmatmul.mubr.bf16.gmra.mrb[0].mxu0 %v384
          %v517 = vpop.f32.mrb[0].mxu0
          %v518 = vadd.f32 %v345, %v517
          %v519 = vpop.f32.mrb[0].mxu0
          %v520 = vpop.f32.mrb[0].mxu0
          %v521 = vadd.f32 %v345, %v520
          %v522 = vpop.f32.mrb[0].mxu0
          %523 = vmatprep.mubr.bf16.mxu0 0
          %524 = vmatmul.mubr.bf16.gmra.mrb[0].mxu0 %v385
          %v525 = vpop.f32.mrb[0].mxu0
          %v526 = vadd.f32 %v345, %v525
          %v527 = vpop.f32.mrb[0].mxu0
          %v528 = vpop.f32.mrb[0].mxu0
          %v529 = vadd.f32 %v345, %v528
          %v530 = vpop.f32.mrb[0].mxu0
          %531 = vmatprep.mubr.bf16.mxu0 0
          %532 = vmatmul.mubr.bf16.gmra.mrb[0].mxu0 %v386
          %v533 = vpop.f32.mrb[0].mxu0
          %v534 = vadd.f32 %v345, %v533
          %v535 = vpop.f32.mrb[0].mxu0
          %v536 = vpop.f32.mrb[0].mxu0
          %v537 = vadd.f32 %v345, %v536
          %v538 = vpop.f32.mrb[0].mxu0
          %539 = vdwg.mxu0
          %v540 = vlaneseq
          %v541 = vshrl.u32 %v540, 7
          %v542 = vadd.s32 %v541, 8
          %v543 = vadd.s32 %v541, 16
          %v544 = vadd.s32 %v541, 24
          %v545 = vadd.s32 %v541, 32
          %v546 = vadd.s32 %v541, 40
          %v547 = vadd.s32 %v541, 48
          %v548 = vadd.s32 %v541, 56
          %v549 = vadd.s32 %v541, 64
          %v550 = vadd.s32 %v541, 72
          %v551 = vadd.s32 %v541, 80
          %v552 = vadd.s32 %v541, 88
          %v553 = vadd.s32 %v541, 96
          %v554 = vadd.s32 %v541, 104
          %v555 = vadd.s32 %v541, 112
          %v556 = vadd.s32 %v541, 120
          %v557 = vstv %s303
          %v558 = vadd.s32 %v557, %v541
          %v559 = vadd.s32 %v557, %v542
          %v560 = vadd.s32 %v557, %v543
          %v561 = vadd.s32 %v557, %v544
          %v562 = vadd.s32 %v557, %v545
          %v563 = vadd.s32 %v557, %v546
          %v564 = vadd.s32 %v557, %v547
          %v565 = vadd.s32 %v557, %v548
          %v566 = vadd.s32 %v557, %v549
          %v567 = vadd.s32 %v557, %v550
          %v568 = vadd.s32 %v557, %v551
          %v569 = vadd.s32 %v557, %v552
          %v570 = vadd.s32 %v557, %v553
          %v571 = vadd.s32 %v557, %v554
          %v572 = vadd.s32 %v557, %v555
          %v573 = vadd.s32 %v557, %v556
          %s574 = sld [smem:[#allocation4]]
          %v575 = vstv %s574
          %vm576 = vcmp.lt.s32.totalorder %v558, %v575
          %vm577 = vcmp.lt.s32.totalorder %v559, %v575
          %vm578 = vcmp.lt.s32.totalorder %v560, %v575
          %vm579 = vcmp.lt.s32.totalorder %v561, %v575
          %vm580 = vcmp.lt.s32.totalorder %v562, %v575
          %vm581 = vcmp.lt.s32.totalorder %v563, %v575
          %vm582 = vcmp.lt.s32.totalorder %v564, %v575
          %vm583 = vcmp.lt.s32.totalorder %v565, %v575
          %vm584 = vcmp.lt.s32.totalorder %v566, %v575
          %vm585 = vcmp.lt.s32.totalorder %v567, %v575
          %vm586 = vcmp.lt.s32.totalorder %v568, %v575
          %vm587 = vcmp.lt.s32.totalorder %v569, %v575
          %vm588 = vcmp.lt.s32.totalorder %v570, %v575
          %vm589 = vcmp.lt.s32.totalorder %v571, %v575
          %vm590 = vcmp.lt.s32.totalorder %v572, %v575
          %vm591 = vcmp.lt.s32.totalorder %v573, %v575
          %v592 = vsel %vm576, 1, 0
          %v593 = vsel %vm577, 1, 0
          %v594 = vsel %vm578, 1, 0
          %v595 = vsel %vm579, 1, 0
          %v596 = vsel %vm580, 1, 0
          %v597 = vsel %vm581, 1, 0
          %v598 = vsel %vm582, 1, 0
          %v599 = vsel %vm583, 1, 0
          %v600 = vsel %vm584, 1, 0
          %v601 = vsel %vm585, 1, 0
          %v602 = vsel %vm586, 1, 0
          %v603 = vsel %vm587, 1, 0
          %v604 = vsel %vm588, 1, 0
          %v605 = vsel %vm589, 1, 0
          %v606 = vsel %vm590, 1, 0
          %v607 = vsel %vm591, 1, 0
          %v608 = vcvt.s32.f32 %v592
          %v609 = vcvt.s32.f32 %v593
          %v610 = vcvt.s32.f32 %v594
          %v611 = vcvt.s32.f32 %v595
          %v612 = vcvt.s32.f32 %v596
          %v613 = vcvt.s32.f32 %v597
          %v614 = vcvt.s32.f32 %v598
          %v615 = vcvt.s32.f32 %v599
          %v616 = vcvt.s32.f32 %v600
          %v617 = vcvt.s32.f32 %v601
          %v618 = vcvt.s32.f32 %v602
          %v619 = vcvt.s32.f32 %v603
          %v620 = vcvt.s32.f32 %v604
          %v621 = vcvt.s32.f32 %v605
          %v622 = vcvt.s32.f32 %v606
          %v623 = vcvt.s32.f32 %v607
          %v624 = vld [vmem:[#allocation2] sm:$0x1]
          %v625 = vmul.f32 %v478, %v608
          %v626 = vmul.f32 %v481, %v609
          %v627 = vmul.f32 %v486, %v610
          %v628 = vmul.f32 %v489, %v611
          %v629 = vmul.f32 %v494, %v612
          %v630 = vmul.f32 %v497, %v613
          %v631 = vmul.f32 %v502, %v614
          %v632 = vmul.f32 %v505, %v615
          %v633 = vmul.f32 %v510, %v616
          %v634 = vmul.f32 %v513, %v617
          %v635 = vmul.f32 %v518, %v618
          %v636 = vmul.f32 %v521, %v619
          %v637 = vmul.f32 %v526, %v620
          %v638 = vmul.f32 %v529, %v621
          %v639 = vmul.f32 %v534, %v622
          %v640 = vmul.f32 %v537, %v623
          %v641 = vadd.f32 %v625, %v626
          %v642 = vadd.f32 %v641, %v627
          %v643 = vadd.f32 %v642, %v628
          %v644 = vadd.f32 %v643, %v629
          %v645 = vadd.f32 %v644, %v630
          %v646 = vadd.f32 %v645, %v631
          %v647 = vadd.f32 %v646, %v632
          %v648 = vadd.f32 %v647, %v633
          %v649 = vadd.f32 %v648, %v634
          %v650 = vadd.f32 %v649, %v635
          %v651 = vadd.f32 %v650, %v636
          %v652 = vadd.f32 %v651, %v637
          %v653 = vadd.f32 %v652, %v638
          %v654 = vadd.f32 %v653, %v639
          %v655 = vadd.f32 %v654, %v640
          %v656 = vrot.slane %v655, 4
          %v657 = vadd.f32 %v655, %v656
          %v658 = vrot.slane %v657, 2
          %v659 = vadd.f32 %v657, %v658
          %v660 = vrot.slane %v659, 1
          %v661 = vadd.f32 %v659, %v660
          %v662 = vadd.f32 %v624, %v661
          %663 = vst [vmem:[#allocation2] sm:$0x1] %v662
          %s664 = sld [smem:[#allocation4 + $0x1]]
          %v665 = vstv %s664
          %vm666 = vcmp.lt.s32.totalorder %v558, %v665
          %vm667 = vcmp.lt.s32.totalorder %v559, %v665
          %vm668 = vcmp.lt.s32.totalorder %v560, %v665
          %vm669 = vcmp.lt.s32.totalorder %v561, %v665
          %vm670 = vcmp.lt.s32.totalorder %v562, %v665
          %vm671 = vcmp.lt.s32.totalorder %v563, %v665
          %vm672 = vcmp.lt.s32.totalorder %v564, %v665
          %vm673 = vcmp.lt.s32.totalorder %v565, %v665
          %vm674 = vcmp.lt.s32.totalorder %v566, %v665
          %vm675 = vcmp.lt.s32.totalorder %v567, %v665
          %vm676 = vcmp.lt.s32.totalorder %v568, %v665
          %vm677 = vcmp.lt.s32.totalorder %v569, %v665
          %vm678 = vcmp.lt.s32.totalorder %v570, %v665
          %vm679 = vcmp.lt.s32.totalorder %v571, %v665
          %vm680 = vcmp.lt.s32.totalorder %v572, %v665
          %vm681 = vcmp.lt.s32.totalorder %v573, %v665
          %v682 = vsel %vm666, 1, 0
          %v683 = vsel %vm667, 1, 0
          %v684 = vsel %vm668, 1, 0
          %v685 = vsel %vm669, 1, 0
          %v686 = vsel %vm670, 1, 0
          %v687 = vsel %vm671, 1, 0
          %v688 = vsel %vm672, 1, 0
          %v689 = vsel %vm673, 1, 0
          %v690 = vsel %vm674, 1, 0
          %v691 = vsel %vm675, 1, 0
          %v692 = vsel %vm676, 1, 0
          %v693 = vsel %vm677, 1, 0
          %v694 = vsel %vm678, 1, 0
          %v695 = vsel %vm679, 1, 0
          %v696 = vsel %vm680, 1, 0
          %v697 = vsel %vm681, 1, 0
          %v698 = vcvt.s32.f32 %v682
          %v699 = vcvt.s32.f32 %v683
          %v700 = vcvt.s32.f32 %v684
          %v701 = vcvt.s32.f32 %v685
          %v702 = vcvt.s32.f32 %v686
          %v703 = vcvt.s32.f32 %v687
          %v704 = vcvt.s32.f32 %v688
          %v705 = vcvt.s32.f32 %v689
          %v706 = vcvt.s32.f32 %v690
          %v707 = vcvt.s32.f32 %v691
          %v708 = vcvt.s32.f32 %v692
          %v709 = vcvt.s32.f32 %v693
          %v710 = vcvt.s32.f32 %v694
          %v711 = vcvt.s32.f32 %v695
          %v712 = vcvt.s32.f32 %v696
          %v713 = vcvt.s32.f32 %v697
          %v714 = vld [vmem:[#allocation2 + $0x1] sm:$0x1]
          %v715 = vmul.f32 %v478, %v698
          %v716 = vmul.f32 %v481, %v699
          %v717 = vmul.f32 %v486, %v700
          %v718 = vmul.f32 %v489, %v701
          %v719 = vmul.f32 %v494, %v702
          %v720 = vmul.f32 %v497, %v703
          %v721 = vmul.f32 %v502, %v704
          %v722 = vmul.f32 %v505, %v705
          %v723 = vmul.f32 %v510, %v706
          %v724 = vmul.f32 %v513, %v707
          %v725 = vmul.f32 %v518, %v708
          %v726 = vmul.f32 %v521, %v709
          %v727 = vmul.f32 %v526, %v710
          %v728 = vmul.f32 %v529, %v711
          %v729 = vmul.f32 %v534, %v712
          %v730 = vmul.f32 %v537, %v713
          %v731 = vadd.f32 %v715, %v716
          %v732 = vadd.f32 %v731, %v717
          %v733 = vadd.f32 %v732, %v718
          %v734 = vadd.f32 %v733, %v719
          %v735 = vadd.f32 %v734, %v720
          %v736 = vadd.f32 %v735, %v721
          %v737 = vadd.f32 %v736, %v722
          %v738 = vadd.f32 %v737, %v723
          %v739 = vadd.f32 %v738, %v724
          %v740 = vadd.f32 %v739, %v725
          %v741 = vadd.f32 %v740, %v726
          %v742 = vadd.f32 %v741, %v727
          %v743 = vadd.f32 %v742, %v728
          %v744 = vadd.f32 %v743, %v729
          %v745 = vadd.f32 %v744, %v730
          %v746 = vrot.slane %v745, 4
          %v747 = vadd.f32 %v745, %v746
          %v748 = vrot.slane %v747, 2
          %v749 = vadd.f32 %v747, %v748
          %v750 = vrot.slane %v749, 1
          %v751 = vadd.f32 %v749, %v750
          %v752 = vadd.f32 %v714, %v751
          %753 = vst [vmem:[#allocation2 + $0x1] sm:$0x1] %v752
        $region64: #{tpu_custom_call.1} parent=43 // pred_fallthru
          _
        %p754 = scmp.eq.s32.totalorder %s27, 1
        // Predicated region
        $region65: #{tpu_custom_call.1} parent=43 // pred_check
          %p755 = pneg %p754
        $region66: #{tpu_custom_call.1} parent=43 // pred_check_branch
          %757 = sbr.rel (%p755) target = $region68
        $region67: #{tpu_custom_call.1} parent=43 // pred_region
          %v758 = vld [vmem:[%s1] sm:$0x1]
          %v759 = vld [vmem:[#allocation5] sm:$0xf]
          %v760 = vld [vmem:[#allocation5 + $0x4] sm:$0xf]
          %v761 = vld [vmem:[#allocation5 + $0x8] sm:$0xf]
          %v762 = vld [vmem:[#allocation5 + $0xc] sm:$0xf]
          %v763 = vld [vmem:[#allocation5 + $0x10] sm:$0xf]
          %v764 = vld [vmem:[#allocation5 + $0x14] sm:$0xf]
          %v765 = vld [vmem:[#allocation5 + $0x18] sm:$0xf]
          %v766 = vld [vmem:[#allocation5 + $0x1c] sm:$0xf]
          %v767 = vld [vmem:[#allocation5 + $0x20] sm:$0xf]
          %v768 = vld [vmem:[#allocation5 + $0x24] sm:$0xf]
          %v769 = vld [vmem:[#allocation5 + $0x28] sm:$0xf]
          %v770 = vld [vmem:[#allocation5 + $0x2c] sm:$0xf]
          %v771 = vld [vmem:[#allocation5 + $0x30] sm:$0xf]
          %v772 = vld [vmem:[#allocation5 + $0x34] sm:$0xf]
          %v773 = vld [vmem:[#allocation5 + $0x38] sm:$0xf]
          %v774 = vld [vmem:[#allocation5 + $0x3c] sm:$0xf]
          %v775 = vld [vmem:[%s3] sm:$0x1]
          %v777 = vlaneseq
          %v778 = vshrl.u32 %v777, 7
          %v779 = vsub.s32 0, %v778
          %v780 = vrot.slane %v775, %v779
          %v798 = vunpack.c.l.b16 %v759
          %v799 = vunpack.c.l.b16 %v760
          %v800 = vunpack.c.l.b16 %v761
          %v801 = vunpack.c.l.b16 %v762
          %v802 = vunpack.c.l.b16 %v763
          %v803 = vunpack.c.l.b16 %v764
          %v804 = vunpack.c.l.b16 %v765
          %v805 = vunpack.c.l.b16 %v766
          %v806 = vunpack.c.l.b16 %v767
          %v807 = vunpack.c.l.b16 %v768
          %v808 = vunpack.c.l.b16 %v769
          %v809 = vunpack.c.l.b16 %v770
          %v810 = vunpack.c.l.b16 %v771
          %v811 = vunpack.c.l.b16 %v772
          %v812 = vunpack.c.l.b16 %v773
          %v813 = vunpack.c.l.b16 %v774
          %v814 = vpack.c.b16 %v799, %v798
          %v815 = vpack.c.b16 %v801, %v800
          %v816 = vpack.c.b16 %v803, %v802
          %v817 = vpack.c.b16 %v805, %v804
          %v818 = vpack.c.b16 %v807, %v806
          %v819 = vpack.c.b16 %v809, %v808
          %v820 = vpack.c.b16 %v811, %v810
          %v821 = vpack.c.b16 %v813, %v812
          %830 = vmatprep.subr.bf16.mxu0 0
          %831 = vmatpush1.bf16.msra.mxu0 %v814
          %832 = vmatprep.subr.bf16.mxu0 0
          %833 = vmatpush1.bf16.msra.mxu0 %v815
          %834 = vmatprep.subr.bf16.mxu0 0
          %835 = vmatpush1.bf16.msra.mxu0 %v816
          %836 = vmatprep.subr.bf16.mxu0 0
          %837 = vmatpush1.bf16.msra.mxu0 %v817
          %838 = vmatprep.subr.bf16.mxu0 0
          %839 = vmatpush1.bf16.msra.mxu0 %v818
          %840 = vmatprep.subr.bf16.mxu0 0
          %841 = vmatpush1.bf16.msra.mxu0 %v819
          %842 = vmatprep.subr.bf16.mxu0 0
          %843 = vmatpush1.bf16.msra.mxu0 %v820
          %844 = vmatprep.subr.bf16.mxu0 0
          %845 = vmatpush1.bf16.msra.mxu0 %v821
          %846 = vmatprep.subr.bf16.mxu0 0
          %847 = vmatpush1.bf16.msra.mxu0 0
          %848 = vmatprep.subr.bf16.mxu0 0
          %849 = vmatpush1.bf16.msra.mxu0 0
          %850 = vmatprep.subr.bf16.mxu0 0
          %851 = vmatpush1.bf16.msra.mxu0 0
          %852 = vmatprep.subr.bf16.mxu0 0
          %853 = vmatpush1.bf16.msra.mxu0 0
          %854 = vmatprep.subr.bf16.mxu0 0
          %855 = vmatpush1.bf16.msra.mxu0 0
          %856 = vmatprep.subr.bf16.mxu0 0
          %857 = vmatpush1.bf16.msra.mxu0 0
          %858 = vmatprep.subr.bf16.mxu0 0
          %859 = vmatpush1.bf16.msra.mxu0 0
          %860 = vmatprep.subr.bf16.mxu0 0
          %861 = vmatpush1.bf16.msra.mxu0 0
          %862 = vmatprep.mubr.bf16.mxu0 0
          %863 = vmatmul.mubr.bf16.gmra.mrb[0].mxu0 %v758
          %v864 = vpop.f32.mrb[0].mxu0
          %v865 = vadd.f32 %v780, %v864
          %v866 = vpop.f32.mrb[0].mxu0
          %v867 = vpop.f32.mrb[0].mxu0
          %v868 = vpop.f32.mrb[0].mxu0
          %869 = vdwg.mxu0
          %v870 = vlaneseq
          %v871 = vshrl.u32 %v870, 7
          %vm872 = vcmp.eq.s32.totalorder %v871, 0
          %s873 = sld [smem:[#allocation4]]
          %s874 = scvt.s32.f32 %s873
          %v875 = vstv %s874
          %v876 = vsel %vm872, %v875, 0.0
          %v877 = vadd.f32 %v876, 1.0
          %vm878 = vcmp.eq.s32.totalorder %v871, 1
          %s879 = sld [smem:[#allocation4 + $0x1]]
          %s880 = scvt.s32.f32 %s879
          %v881 = vstv %s880
          %v882 = vsel %vm878, %v881, 0.0
          %v883 = vadd.f32 %v877, %v882
          %v884 = vrcp.pop %v883
          %v885 = vld [vmem:[#allocation2] sm:$0x3]
          %v886 = vadd.f32 %v885, %v865
          %v887 = vmul.f32 %v886, %v884
          %888 = vst [vmem:[#allocation11] sm:$0x3] %v887
        $region68: #{tpu_custom_call.1} parent=43 // pred_fallthru
          _
        // Predicated region
        $region69: #{tpu_custom_call.1} parent=43 // pred_check
          %p889 = pneg %p171
        $region70: #{tpu_custom_call.1} parent=43 // pred_check_branch
          %891 = sbr.rel (%p889) target = $region72
        $region71: #{tpu_custom_call.1} parent=43 // pred_region
          %s893 = ssub.s32 32, 32
          %894 = vsyncadd [#allocation7], %s893
          %s896 = sshll.u32 [#allocation11], 4
          %s897 = int_to_ptr.vmem [resolvable:$true] %s896
          %899 = dma.vmem_to_hbm [thread:$0]  %s897, 32, %s7, [#allocation7]
        $region72: #{tpu_custom_call.1} parent=43 // pred_fallthru
          _
        // Predicated region
        $region73: #{tpu_custom_call.1} parent=43 // pred_check
          %p900 = pneg %p171
        $region74: #{tpu_custom_call.1} parent=43 // pred_check_branch
          %902 = sbr.rel (%p900) target = $region76
        $region75: #{tpu_custom_call.1} parent=43 // pred_region
          %903 = dma.done [#allocation7], 32
        $region76: #{tpu_custom_call.1} parent=43 // pred_fallthru
          _
      $region44: #{tpu_custom_call.1} parent=5 // pred_fallthru
        _
      %p904 = scmp.le.s32.totalorder 2, %s22
      // Predicated region
      $region77: #{tpu_custom_call.1} parent=5 // pred_check
        %p905 = pneg %p904
      $region78: #{tpu_custom_call.1} parent=5 // pred_check_branch
        %907 = sbr.rel (%p905) target = $region80
      $region79: #{tpu_custom_call.1} parent=5 // pred_region
        %s908 = ssub.s32 %s22, 2
      $region80: #{tpu_custom_call.1} parent=5 // pred_fallthru
        _
    $region6: #{tpu_custom_call.1} parent=1 // loop_footer
      %s26 = sadd.s32 1, %s22
    $region7: #{tpu_custom_call.1} parent=1 // loop_footer_branch
      %21 = sbr.rel target = $region3
    $region8: #{tpu_custom_call.1} parent=1 // loop_exit
      _
    %909 = vsyncpa [#allocation6], 1
    %s910 = scalar_lea.sflag [#allocation6], 1
    %911 = vsyncpa %s910, 1
    %912 = vsyncpa [#allocation9], 1
    %s913 = scalar_lea.sflag [#allocation9], 1
    %914 = vsyncpa %s913, 1
    %915 = vsyncpa [#allocation7], 1
    %s916 = scalar_lea.sflag [#allocation7], 1
    %917 = vsyncpa %s916, 1

</llo_original>
